<compile_context>
chip_gen: v7x
topology: tpu7x:2x2x1
jax: 0.10.0
libtpu: 0.0.40
codegen_flags: <defaults>
</compile_context>

<pallas_src>
import functools
import math

import jax
import jax.numpy as jnp
from jax import lax
from jax.experimental import pallas as pl
from jax.experimental.pallas import tpu as pltpu


def _mhsa_kernel(x_ref, wqkv_ref, bqkv_ref, wo_ref, bo_ref, o_ref,
                 *, num_heads, head_dim, embed_dim):
    """One grid step = one batch element.

    Blocks:
      x_ref    : (1, S, E)   bf16 activations for this batch element
      wqkv_ref : (E, 3E)     bf16 fused QKV weights (scale folded into Q third)
      bqkv_ref : (1, 3E)     f32 fused QKV bias (scale folded into Q third)
      wo_ref   : (E, E)      bf16 output projection (pre-transposed for x @ W)
      bo_ref   : (1, E)      f32 output-projection bias
      o_ref    : (1, S, E)   output block
    """
    x = x_ref[0]                                                     # (S, E) bf16

    # Fused QKV projection: single full-width MXU matmul, f32 accumulation.
    qkv = jnp.dot(x, wqkv_ref[...], preferred_element_type=jnp.float32)
    qkv = qkv + bqkv_ref[...]                                        # (S, 3E) f32

    head_outs = []
    for h in range(num_heads):                                       # H small: static unroll
        lo = h * head_dim
        q = qkv[:, lo:lo + head_dim].astype(jnp.bfloat16)            # scale already folded in
        k = qkv[:, embed_dim + lo:embed_dim + lo + head_dim].astype(jnp.bfloat16)
        v = qkv[:, 2 * embed_dim + lo:2 * embed_dim + lo + head_dim].astype(jnp.bfloat16)

        # scores[i, j] = q_i . k_j  -- contract the head dims directly (no k^T tile).
        scores = lax.dot_general(q, k, (((1,), (1,)), ((), ())),
                                 preferred_element_type=jnp.float32)  # (S, S) f32

        # Softmax over keys in f32; normalization deferred past P @ V.
        m = jnp.max(scores, axis=-1, keepdims=True)
        p = jnp.exp(scores - m)
        denom = jnp.sum(p, axis=-1, keepdims=True)

        o_h = jnp.dot(p.astype(jnp.bfloat16), v,
                      preferred_element_type=jnp.float32)             # (S, hd) f32
        o_h = o_h * pl.reciprocal(denom, approx=True)                 # EUP slot
        head_outs.append(o_h.astype(jnp.bfloat16))

    attn = jnp.concatenate(head_outs, axis=-1)                        # (S, E) bf16

    # One full-depth output projection: (S, E) @ (E, E) + bias.
    out = jnp.dot(attn, wo_ref[...], preferred_element_type=jnp.float32)
    out = out + bo_ref[...]
    o_ref[0] = out.astype(o_ref.dtype)


def multi_head_self_attention(x, in_proj_weight, in_proj_bias,
                              out_proj_weight, out_proj_bias, *, num_heads):
    """x: (B, S, E).  Parameters follow torch.nn.MultiheadAttention layout."""
    B, S, E = x.shape
    assert E % num_heads == 0, "embed_dim must be divisible by num_heads"
    hd = E // num_heads
    scale = 1.0 / math.sqrt(hd)

    # ---- One-time wrapper-side parameter re-layout (no in-kernel transposes) ----
    # torch: y = x @ W.T + b, in_proj_weight is (3E, E) with Q rows first.
    # Fold the softmax scale into the Q rows/bias, transpose to (E, 3E) for x @ W.
    scale_vec = jnp.concatenate(
        [jnp.full((E,), scale, jnp.float32), jnp.ones((2 * E,), jnp.float32)])
    wqkv = (in_proj_weight * scale_vec[:, None]).T.astype(jnp.bfloat16)   # (E, 3E)
    bqkv = (in_proj_bias * scale_vec).reshape(1, 3 * E).astype(jnp.float32)

    wo = out_proj_weight.T.astype(jnp.bfloat16)                           # (E, E)
    bo = out_proj_bias.reshape(1, E).astype(jnp.float32)

    xb = x.astype(jnp.bfloat16)    # bf16 MXU operands; f32 accumulation in-kernel

    kernel = functools.partial(_mhsa_kernel, num_heads=num_heads,
                               head_dim=hd, embed_dim=E)

    # Rough VMEM estimate (resident weights + double-buffered x/out blocks +
    # in-kernel intermediates), with 4x safety factor, clamped to sane bounds.
    est_bytes = (
        (3 * E * E + E * E) * 2          # resident bf16 weights
        + 4 * E * 4                      # biases (f32)
        + 4 * S * E * 2                  # x / out blocks, double-buffered (bf16)
        + S * 3 * E * 4                  # fused QKV intermediate (f32)
        + S * S * 4                      # one (S, S) f32 score tile
        + 2 * S * E * 4                  # attn concat + final f32 output tile
    )
    vmem_limit = int(min(max(4 * est_bytes, 4 * 1024 * 1024), 64 * 1024 * 1024))

    return pl.pallas_call(
        kernel,
        out_shape=jax.ShapeDtypeStruct((B, S, E), x.dtype),
        grid_spec=pltpu.PrefetchScalarGridSpec(
            num_scalar_prefetch=0,
            grid=(B,),
            in_specs=[
                pl.BlockSpec((1, S, E),   lambda b: (b, 0, 0)),   # x (per batch)
                pl.BlockSpec((E, 3 * E),  lambda b: (0, 0)),      # Wqkv (VMEM-resident)
                pl.BlockSpec((1, 3 * E),  lambda b: (0, 0)),      # bqkv
                pl.BlockSpec((E, E),      lambda b: (0, 0)),      # Wo   (VMEM-resident)
                pl.BlockSpec((1, E),      lambda b: (0, 0)),      # bo
            ],
            out_specs=pl.BlockSpec((1, S, E), lambda b: (b, 0, 0)),
        ),
        compiler_params=pltpu.CompilerParams(
            dimension_semantics=("parallel",),       # batch shards across TCs (v7x)
            vmem_limit_bytes=vmem_limit,
        ),
    )(xb, wqkv, bqkv, wo, bo)


def _reference_mhsa(x, wqkv, bqkv, wo, bo, num_heads):
    """Pure-JAX f32 reference matching torch.nn.MultiheadAttention semantics."""
    B, S, E = x.shape
    hd = E // num_heads
    qkv = jnp.einsum("bse,fe->bsf", x, wqkv) + bqkv            # (B, S, 3E)
    q, k, v = jnp.split(qkv, 3, axis=-1)
    q = q.reshape(B, S, num_heads, hd).transpose(0, 2, 1, 3)   # (B, H, S, hd)
    k = k.reshape(B, S, num_heads, hd).transpose(0, 2, 1, 3)
    v = v.reshape(B, S, num_heads, hd).transpose(0, 2, 1, 3)
    scores = jnp.einsum("bhqd,bhkd->bhqk", q, k) / math.sqrt(hd)
    p = jax.nn.softmax(scores, axis=-1)
    o = jnp.einsum("bhqk,bhkd->bhqd", p, v)                    # (B, H, S, hd)
    o = o.transpose(0, 2, 1, 3).reshape(B, S, E)
    return jnp.einsum("bse,fe->bsf", o, wo) + bo


if __name__ == "__main__":
    B, S, E, H = 2, 16, 128, 4    # batch, seq, embed_dim (lane-dense), heads (hd=32)

    key = jax.random.PRNGKey(0)
    kx, kw1, kb1, kw2, kb2 = jax.random.split(key, 5)

    x = jax.random.normal(kx, (B, S, E), dtype=jnp.float32)

    bound = 1.0 / math.sqrt(E)
    in_proj_weight = jax.random.uniform(kw1, (3 * E, E), jnp.float32, -bound, bound)
    in_proj_bias = jax.random.uniform(kb1, (3 * E,), jnp.float32, -bound, bound)
    out_proj_weight = jax.random.uniform(kw2, (E, E), jnp.float32, -bound, bound)
    out_proj_bias = jax.random.uniform(kb2, (E,), jnp.float32, -bound, bound)

    out = multi_head_self_attention(
        x, in_proj_weight, in_proj_bias, out_proj_weight, out_proj_bias,
        num_heads=H)
    out = jax.block_until_ready(out)

    ref = _reference_mhsa(x, in_proj_weight, in_proj_bias,
                          out_proj_weight, out_proj_bias, H)
    assert out.shape == (B, S, E)
    max_err = float(jnp.max(jnp.abs(out - ref)))
    assert jnp.allclose(out, ref, atol=2e-2, rtol=2e-2), (
        f"mismatch vs reference (max abs err {max_err})")

    print("KERNEL_OK")
</pallas_src>

<mosaic_0001>
module attributes {stable_mosaic.version = 11 : i64} {
  func.func @_mhsa_kernel(%arg0: i32, %arg1: memref<1x16x128xbf16, #tpu.memory_space<vmem>>, %arg2: memref<128x384xbf16, #tpu.memory_space<vmem>>, %arg3: memref<1x384xf32, #tpu.memory_space<vmem>>, %arg4: memref<128x128xbf16, #tpu.memory_space<vmem>>, %arg5: memref<1x128xf32, #tpu.memory_space<vmem>>, %arg6: memref<1x16x128xf32, #tpu.memory_space<vmem>>) attributes {dimension_semantics = [#tpu.dimension_semantics<parallel>], iteration_bounds = array<i64: 2>, scalar_prefetch = 0 : i64, scratch_operands = 0 : i64, tpu.core_type = #tpu.core_type<tc>, window_params = [{transform_indices = @transform_0, window_bounds = array<i64: 1, 16, 128>}, {pipeline_mode = #tpu.pipeline_mode<synchronous>, transform_indices = @transform_1, window_bounds = array<i64: 128, 384>}, {pipeline_mode = #tpu.pipeline_mode<synchronous>, transform_indices = @transform_2, window_bounds = array<i64: 1, 384>}, {pipeline_mode = #tpu.pipeline_mode<synchronous>, transform_indices = @transform_3, window_bounds = array<i64: 128, 128>}, {pipeline_mode = #tpu.pipeline_mode<synchronous>, transform_indices = @transform_4, window_bounds = array<i64: 1, 128>}, {transform_indices = @transform_5, window_bounds = array<i64: 1, 16, 128>}]} {
    %c0 = arith.constant 0 : index
    %c0_0 = arith.constant 0 : index
    %c0_1 = arith.constant 0 : index
    %0 = vector.load %arg1[%c0, %c0_0, %c0_1] : memref<1x16x128xbf16, #tpu.memory_space<vmem>>, vector<1x16x128xbf16>
    %1 = vector.shape_cast %0 : vector<1x16x128xbf16> to vector<16x128xbf16>
    %c0_2 = arith.constant 0 : index
    %c0_3 = arith.constant 0 : index
    %2 = vector.load %arg2[%c0_2, %c0_3] : memref<128x384xbf16, #tpu.memory_space<vmem>>, vector<128x384xbf16>
    %cst = arith.constant dense<0.000000e+00> : vector<16x384xf32>
    %3 = tpu.matmul %1, %2, %cst {dimension_numbers = #tpu.dot_dimension_numbers<[1], [0], [0], [1], [0, 0, 1, 1], [], []>} : vector<16x128xbf16>, vector<128x384xbf16>, vector<16x384xf32> -> vector<16x384xf32>
    %c0_4 = arith.constant 0 : index
    %c0_5 = arith.constant 0 : index
    %4 = vector.load %arg3[%c0_4, %c0_5] : memref<1x384xf32, #tpu.memory_space<vmem>>, vector<1x384xf32>
    %5 = vector.broadcast %4 : vector<1x384xf32> to vector<16x384xf32>
    %6 = arith.addf %3, %5 : vector<16x384xf32>
    %7 = vector.extract_strided_slice %6 {offsets = [0, 0], sizes = [16, 32], strides = [1, 1]} : vector<16x384xf32> to vector<16x32xf32>
    %8 = arith.truncf %7 : vector<16x32xf32> to vector<16x32xbf16>
    %9 = vector.extract_strided_slice %6 {offsets = [0, 128], sizes = [16, 32], strides = [1, 1]} : vector<16x384xf32> to vector<16x32xf32>
    %10 = arith.truncf %9 : vector<16x32xf32> to vector<16x32xbf16>
    %11 = vector.extract_strided_slice %6 {offsets = [0, 256], sizes = [16, 32], strides = [1, 1]} : vector<16x384xf32> to vector<16x32xf32>
    %12 = arith.truncf %11 : vector<16x32xf32> to vector<16x32xbf16>
    %cst_6 = arith.constant dense<0.000000e+00> : vector<16x16xf32>
    %13 = tpu.matmul %8, %10, %cst_6 {dimension_numbers = #tpu.dot_dimension_numbers<[1], [1], [0], [0], [0, 0, 1, 0], [], []>} : vector<16x32xbf16>, vector<16x32xbf16>, vector<16x16xf32> -> vector<16x16xf32>
    %cst_7 = arith.constant dense<0xFF800000> : vector<16xf32>
    %14 = vector.multi_reduction <maximumf>, %13, %cst_7 [1] : vector<16x16xf32> to vector<16xf32>
    %15 = vector.shape_cast %14 : vector<16xf32> to vector<16x1xf32>
    %16 = vector.broadcast %15 : vector<16x1xf32> to vector<16x16xf32>
    %17 = arith.subf %13, %16 : vector<16x16xf32>
    %18 = math.exp %17 : vector<16x16xf32>
    %cst_8 = arith.constant dense<0.000000e+00> : vector<16xf32>
    %19 = vector.multi_reduction <add>, %18, %cst_8 [1] : vector<16x16xf32> to vector<16xf32>
    %20 = vector.shape_cast %19 : vector<16xf32> to vector<16x1xf32>
    %21 = arith.truncf %18 : vector<16x16xf32> to vector<16x16xbf16>
    %cst_9 = arith.constant dense<0.000000e+00> : vector<16x32xf32>
    %22 = tpu.matmul %21, %12, %cst_9 {dimension_numbers = #tpu.dot_dimension_numbers<[1], [0], [0], [1], [0, 0, 1, 1], [], []>} : vector<16x16xbf16>, vector<16x32xbf16>, vector<16x32xf32> -> vector<16x32xf32>
    %23 = tpu.reciprocal %20 {approx = true} : vector<16x1xf32> -> vector<16x1xf32>
    %24 = vector.broadcast %23 : vector<16x1xf32> to vector<16x32xf32>
    %25 = arith.mulf %22, %24 : vector<16x32xf32>
    %26 = arith.truncf %25 : vector<16x32xf32> to vector<16x32xbf16>
    %27 = vector.extract_strided_slice %6 {offsets = [0, 32], sizes = [16, 32], strides = [1, 1]} : vector<16x384xf32> to vector<16x32xf32>
    %28 = arith.truncf %27 : vector<16x32xf32> to vector<16x32xbf16>
    %29 = vector.extract_strided_slice %6 {offsets = [0, 160], sizes = [16, 32], strides = [1, 1]} : vector<16x384xf32> to vector<16x32xf32>
    %30 = arith.truncf %29 : vector<16x32xf32> to vector<16x32xbf16>
    %31 = vector.extract_strided_slice %6 {offsets = [0, 288], sizes = [16, 32], strides = [1, 1]} : vector<16x384xf32> to vector<16x32xf32>
    %32 = arith.truncf %31 : vector<16x32xf32> to vector<16x32xbf16>
    %cst_10 = arith.constant dense<0.000000e+00> : vector<16x16xf32>
    %33 = tpu.matmul %28, %30, %cst_10 {dimension_numbers = #tpu.dot_dimension_numbers<[1], [1], [0], [0], [0, 0, 1, 0], [], []>} : vector<16x32xbf16>, vector<16x32xbf16>, vector<16x16xf32> -> vector<16x16xf32>
    %cst_11 = arith.constant dense<0xFF800000> : vector<16xf32>
    %34 = vector.multi_reduction <maximumf>, %33, %cst_11 [1] : vector<16x16xf32> to vector<16xf32>
    %35 = vector.shape_cast %34 : vector<16xf32> to vector<16x1xf32>
    %36 = vector.broadcast %35 : vector<16x1xf32> to vector<16x16xf32>
    %37 = arith.subf %33, %36 : vector<16x16xf32>
    %38 = math.exp %37 : vector<16x16xf32>
    %cst_12 = arith.constant dense<0.000000e+00> : vector<16xf32>
    %39 = vector.multi_reduction <add>, %38, %cst_12 [1] : vector<16x16xf32> to vector<16xf32>
    %40 = vector.shape_cast %39 : vector<16xf32> to vector<16x1xf32>
    %41 = arith.truncf %38 : vector<16x16xf32> to vector<16x16xbf16>
    %cst_13 = arith.constant dense<0.000000e+00> : vector<16x32xf32>
    %42 = tpu.matmul %41, %32, %cst_13 {dimension_numbers = #tpu.dot_dimension_numbers<[1], [0], [0], [1], [0, 0, 1, 1], [], []>} : vector<16x16xbf16>, vector<16x32xbf16>, vector<16x32xf32> -> vector<16x32xf32>
    %43 = tpu.reciprocal %40 {approx = true} : vector<16x1xf32> -> vector<16x1xf32>
    %44 = vector.broadcast %43 : vector<16x1xf32> to vector<16x32xf32>
    %45 = arith.mulf %42, %44 : vector<16x32xf32>
    %46 = arith.truncf %45 : vector<16x32xf32> to vector<16x32xbf16>
    %47 = vector.extract_strided_slice %6 {offsets = [0, 64], sizes = [16, 32], strides = [1, 1]} : vector<16x384xf32> to vector<16x32xf32>
    %48 = arith.truncf %47 : vector<16x32xf32> to vector<16x32xbf16>
    %49 = vector.extract_strided_slice %6 {offsets = [0, 192], sizes = [16, 32], strides = [1, 1]} : vector<16x384xf32> to vector<16x32xf32>
    %50 = arith.truncf %49 : vector<16x32xf32> to vector<16x32xbf16>
    %51 = vector.extract_strided_slice %6 {offsets = [0, 320], sizes = [16, 32], strides = [1, 1]} : vector<16x384xf32> to vector<16x32xf32>
    %52 = arith.truncf %51 : vector<16x32xf32> to vector<16x32xbf16>
    %cst_14 = arith.constant dense<0.000000e+00> : vector<16x16xf32>
    %53 = tpu.matmul %48, %50, %cst_14 {dimension_numbers = #tpu.dot_dimension_numbers<[1], [1], [0], [0], [0, 0, 1, 0], [], []>} : vector<16x32xbf16>, vector<16x32xbf16>, vector<16x16xf32> -> vector<16x16xf32>
    %cst_15 = arith.constant dense<0xFF800000> : vector<16xf32>
    %54 = vector.multi_reduction <maximumf>, %53, %cst_15 [1] : vector<16x16xf32> to vector<16xf32>
    %55 = vector.shape_cast %54 : vector<16xf32> to vector<16x1xf32>
    %56 = vector.broadcast %55 : vector<16x1xf32> to vector<16x16xf32>
    %57 = arith.subf %53, %56 : vector<16x16xf32>
    %58 = math.exp %57 : vector<16x16xf32>
    %cst_16 = arith.constant dense<0.000000e+00> : vector<16xf32>
    %59 = vector.multi_reduction <add>, %58, %cst_16 [1] : vector<16x16xf32> to vector<16xf32>
    %60 = vector.shape_cast %59 : vector<16xf32> to vector<16x1xf32>
    %61 = arith.truncf %58 : vector<16x16xf32> to vector<16x16xbf16>
    %cst_17 = arith.constant dense<0.000000e+00> : vector<16x32xf32>
    %62 = tpu.matmul %61, %52, %cst_17 {dimension_numbers = #tpu.dot_dimension_numbers<[1], [0], [0], [1], [0, 0, 1, 1], [], []>} : vector<16x16xbf16>, vector<16x32xbf16>, vector<16x32xf32> -> vector<16x32xf32>
    %63 = tpu.reciprocal %60 {approx = true} : vector<16x1xf32> -> vector<16x1xf32>
    %64 = vector.broadcast %63 : vector<16x1xf32> to vector<16x32xf32>
    %65 = arith.mulf %62, %64 : vector<16x32xf32>
    %66 = arith.truncf %65 : vector<16x32xf32> to vector<16x32xbf16>
    %67 = vector.extract_strided_slice %6 {offsets = [0, 96], sizes = [16, 32], strides = [1, 1]} : vector<16x384xf32> to vector<16x32xf32>
    %68 = arith.truncf %67 : vector<16x32xf32> to vector<16x32xbf16>
    %69 = vector.extract_strided_slice %6 {offsets = [0, 224], sizes = [16, 32], strides = [1, 1]} : vector<16x384xf32> to vector<16x32xf32>
    %70 = arith.truncf %69 : vector<16x32xf32> to vector<16x32xbf16>
    %71 = vector.extract_strided_slice %6 {offsets = [0, 352], sizes = [16, 32], strides = [1, 1]} : vector<16x384xf32> to vector<16x32xf32>
    %72 = arith.truncf %71 : vector<16x32xf32> to vector<16x32xbf16>
    %cst_18 = arith.constant dense<0.000000e+00> : vector<16x16xf32>
    %73 = tpu.matmul %68, %70, %cst_18 {dimension_numbers = #tpu.dot_dimension_numbers<[1], [1], [0], [0], [0, 0, 1, 0], [], []>} : vector<16x32xbf16>, vector<16x32xbf16>, vector<16x16xf32> -> vector<16x16xf32>
    %cst_19 = arith.constant dense<0xFF800000> : vector<16xf32>
    %74 = vector.multi_reduction <maximumf>, %73, %cst_19 [1] : vector<16x16xf32> to vector<16xf32>
    %75 = vector.shape_cast %74 : vector<16xf32> to vector<16x1xf32>
    %76 = vector.broadcast %75 : vector<16x1xf32> to vector<16x16xf32>
    %77 = arith.subf %73, %76 : vector<16x16xf32>
    %78 = math.exp %77 : vector<16x16xf32>
    %cst_20 = arith.constant dense<0.000000e+00> : vector<16xf32>
    %79 = vector.multi_reduction <add>, %78, %cst_20 [1] : vector<16x16xf32> to vector<16xf32>
    %80 = vector.shape_cast %79 : vector<16xf32> to vector<16x1xf32>
    %81 = arith.truncf %78 : vector<16x16xf32> to vector<16x16xbf16>
    %cst_21 = arith.constant dense<0.000000e+00> : vector<16x32xf32>
    %82 = tpu.matmul %81, %72, %cst_21 {dimension_numbers = #tpu.dot_dimension_numbers<[1], [0], [0], [1], [0, 0, 1, 1], [], []>} : vector<16x16xbf16>, vector<16x32xbf16>, vector<16x32xf32> -> vector<16x32xf32>
    %83 = tpu.reciprocal %80 {approx = true} : vector<16x1xf32> -> vector<16x1xf32>
    %84 = vector.broadcast %83 : vector<16x1xf32> to vector<16x32xf32>
    %85 = arith.mulf %82, %84 : vector<16x32xf32>
    %86 = arith.truncf %85 : vector<16x32xf32> to vector<16x32xbf16>
    %87 = tpu.concatenate %26, %46, %66, %86 in 1 : vector<16x32xbf16>, vector<16x32xbf16>, vector<16x32xbf16>, vector<16x32xbf16> -> vector<16x128xbf16>
    %c0_22 = arith.constant 0 : index
    %c0_23 = arith.constant 0 : index
    %88 = vector.load %arg4[%c0_22, %c0_23] : memref<128x128xbf16, #tpu.memory_space<vmem>>, vector<128x128xbf16>
    %cst_24 = arith.constant dense<0.000000e+00> : vector<16x128xf32>
    %89 = tpu.matmul %87, %88, %cst_24 {dimension_numbers = #tpu.dot_dimension_numbers<[1], [0], [0], [1], [0, 0, 1, 1], [], []>} : vector<16x128xbf16>, vector<128x128xbf16>, vector<16x128xf32> -> vector<16x128xf32>
    %c0_25 = arith.constant 0 : index
    %c0_26 = arith.constant 0 : index
    %90 = vector.load %arg5[%c0_25, %c0_26] : memref<1x128xf32, #tpu.memory_space<vmem>>, vector<1x128xf32>
    %91 = vector.broadcast %90 : vector<1x128xf32> to vector<16x128xf32>
    %92 = arith.addf %89, %91 : vector<16x128xf32>
    %c0_27 = arith.constant 0 : index
    %c0_28 = arith.constant 0 : index
    %c0_29 = arith.constant 0 : index
    %93 = vector.load %arg6[%c0_27, %c0_28, %c0_29] : memref<1x16x128xf32, #tpu.memory_space<vmem>>, vector<1x16x128xf32>
    %94 = vector.shape_cast %93 : vector<1x16x128xf32> to vector<16x128xf32>
    %95 = vector.shape_cast %92 : vector<16x128xf32> to vector<1x16x128xf32>
    tpu.vector_store %arg6[%c0_27, %c0_28, %c0_29], %95 {strides = array<i32>} : memref<1x16x128xf32, #tpu.memory_space<vmem>>, vector<1x16x128xf32>,
    return
  }
  func.func @transform_0(%arg0: i32) -> (i32, i32, i32) {
    %c0_i32 = arith.constant 0 : i32
    %c0_i32_0 = arith.constant 0 : i32
    %c0_i32_1 = arith.constant 0 : i32
    return %arg0, %c0_i32, %c0_i32_0 : i32, i32, i32
  }
  func.func @transform_1(%arg0: i32) -> (i32, i32) {
    %c0_i32 = arith.constant 0 : i32
    %c0_i32_0 = arith.constant 0 : i32
    %c0_i32_1 = arith.constant 0 : i32
    return %c0_i32, %c0_i32_0 : i32, i32
  }
  func.func @transform_2(%arg0: i32) -> (i32, i32) {
    %c0_i32 = arith.constant 0 : i32
    %c0_i32_0 = arith.constant 0 : i32
    %c0_i32_1 = arith.constant 0 : i32
    return %c0_i32, %c0_i32_0 : i32, i32
  }
  func.func @transform_3(%arg0: i32) -> (i32, i32) {
    %c0_i32 = arith.constant 0 : i32
    %c0_i32_0 = arith.constant 0 : i32
    %c0_i32_1 = arith.constant 0 : i32
    return %c0_i32, %c0_i32_0 : i32, i32
  }
  func.func @transform_4(%arg0: i32) -> (i32, i32) {
    %c0_i32 = arith.constant 0 : i32
    %c0_i32_0 = arith.constant 0 : i32
    %c0_i32_1 = arith.constant 0 : i32
    return %c0_i32, %c0_i32_0 : i32, i32
  }
  func.func @transform_5(%arg0: i32) -> (i32, i32, i32) {
    %c0_i32 = arith.constant 0 : i32
    %c0_i32_0 = arith.constant 0 : i32
    %c0_i32_1 = arith.constant 0 : i32
    return %arg0, %c0_i32, %c0_i32_0 : i32, i32, i32
  }
}

</mosaic_0001>

<llo_original>
// kernel: tpu_custom_call.1
$region0: #{tpu_custom_call.1}
  #allocation0 [shape = 'u32[]', space=smem, size = 0x4, offset = 0x4, fixed_abs, tag = 'smem constant byte address 0x4 - core index']
  #allocation1 [shape = 'u32[144,128]{1,0:T(1,128)}', space=vmem, size = 0x12000, scoped, tag = 'internal scratch']
  %s0 = inlined_call_operand.hbm [shape: bf16[2,16,128], index: 0, kind: input, shape index: {}]
  %s1 = inlined_call_operand.hbm [shape: bf16[128,384], index: 1, kind: input, shape index: {}]
  %s2 = inlined_call_operand.vmem [shape: f32[1,384], index: 2, kind: input, shape index: {}]
  %s3 = inlined_call_operand.hbm [shape: bf16[128,128], index: 3, kind: input, shape index: {}]
  %s4 = inlined_call_operand.vmem [shape: f32[1,128], index: 4, kind: input, shape index: {}]
  %s5 = inlined_call_operand.hbm [shape: f32[2,16,128], index: 5, kind: output, shape index: {}]
  %s6 = sld [smem:[#allocation0]]
  $region65: #{tpu_custom_call.1} parent=0
    _
  %s8 = ssub.s32 1, %s6
  %s9 = scalar_select 0, %s8, %s6
  $region1: #{tpu_custom_call.1} parent=0
    #allocation2 [shape = 'u8[8192]{0}', space=vmem, size = 0x2000, scoped, tag = 'input window, operand 0']
    #allocation3 [shape = 's32[2]{0}', space=sflag, size = 0x8, scoped, tag = 'scoped memory for tpu_custom_call.1']
    #allocation4 [shape = 's32[2]{0}', space=sflag, size = 0x8, scoped, tag = 'scoped memory for tpu_custom_call.1']
    #allocation5 [shape = 'u8[98304]{0}', space=vmem, size = 0x18000, scoped, tag = 'input window, operand 1, single buffered']
    #allocation6 [shape = 's32[1]{0}', space=sflag, size = 0x4, scoped, tag = 'scoped memory for tpu_custom_call.1']
    #allocation7 [shape = 'u8[32768]{0}', space=vmem, size = 0x8000, scoped, tag = 'input window, operand 3, single buffered']
    #allocation8 [shape = 'u8[16384]{0}', space=vmem, size = 0x4000, scoped, tag = 'output window, operand 0']
    %10 = vsyncpa [#allocation3], 0
    %s11 = scalar_lea.sflag [#allocation3], 1
    %12 = vsyncpa %s11, 0
    %13 = vsyncpa [#allocation6], 0
    %14 = vsyncpa [#allocation4], 0
    %s15 = scalar_lea.sflag [#allocation4], 1
    %16 = vsyncpa %s15, 0
    loop: start=0, step=1, limit=4
    $region2: #{tpu_custom_call.1} parent=1 // loop_pre_header
      _
    $region3: #{tpu_custom_call.1} parent=1 // loop_header
      %s18 = sphi 0, %s22
      %p19 = scmp.ge.s32.totalorder %s18, 4
      %s28 = sphi 0, %s30
      %s31 = sphi 0, %s28
      %s32 = sphi 0, %s31
      %s48 = sphi 0, %s32
      %s52 = sphi 0, %s52
      %s54 = sphi 0, %s52
      %s55 = sphi 0, %s54
      %s69 = sphi 0, %s55
      %s73 = sphi 0, %s73
      %s75 = sphi 0, %s73
      %s76 = sphi 0, %s75
      %s90 = sphi 0, %s76
      %s94 = sphi 0, %s94
      %s96 = sphi 0, %s94
      %s97 = sphi 0, %s96
      %s111 = sphi 0, %s97
      %s115 = sphi 0, %s115
      %s117 = sphi 0, %s115
      %s118 = sphi 0, %s117
      %s132 = sphi 0, %s118
      %s138 = sphi 0, %s140
      %s141 = sphi 0, %s138
      %s142 = sphi 0, %s141
      %s158 = sphi 0, %s142
    $region4: #{tpu_custom_call.1} parent=1 // loop_header_branch
      %21 = sbr.rel (%p19) target = $region8
    $region5: #{tpu_custom_call.1} parent=1 // loop_body
      %s23 = ssub.s32 %s18, 1
      %s24 = ssub.s32 %s18, 2
      %s25 = sadd.s32 %s18, 1
      %s26 = ssub.s32 %s18, %s25
      %p27 = scmp.eq.s32.totalorder %s26, 0
      %s29 = sadd.s32 %s28, 1
      %s30 = scalar_select %p27, %s28, %s29
      %p33 = pneg %p27
      %p34 = scmp.eq.s32.totalorder %s18, 1
      %p35 = por %p33, %p34
      %p36 = scmp.ne.s32.totalorder %s28, %s31
      %p37 = scmp.eq.s32.totalorder %s18, 0
      %p38 = por %p36, %p37
      %p39 = scmp.ne.s32.totalorder %s28, %s31
      %p40 = scmp.eq.s32.totalorder %s23, 1
      %p41 = por %p39, %p40
      %p42 = scmp.ne.s32.totalorder %s31, %s32
      %p43 = scmp.eq.s32.totalorder %s23, 0
      %p44 = por %p42, %p43
      %p45 = scmp.ne.s32.totalorder %s31, %s32
      %p46 = scmp.eq.s32.totalorder %s24, 1
      %p47 = por %p45, %p46
      %p49 = scmp.ne.s32.totalorder %s32, %s48
      %p50 = scmp.eq.s32.totalorder %s24, 0
      %p51 = por %p49, %p50
      %s53 = sadd.s32 %s52, 1
      %p56 = scmp.eq.s32.totalorder %s18, 1
      %p57 = scmp.ne.s32.totalorder %s52, %s54
      %p58 = scmp.eq.s32.totalorder %s18, 0
      %p59 = por %p57, %p58
      %p60 = scmp.ne.s32.totalorder %s52, %s54
      %p61 = scmp.eq.s32.totalorder %s23, 1
      %p62 = por %p60, %p61
      %p63 = scmp.ne.s32.totalorder %s54, %s55
      %p64 = scmp.eq.s32.totalorder %s23, 0
      %p65 = por %p63, %p64
      %p66 = scmp.ne.s32.totalorder %s54, %s55
      %p67 = scmp.eq.s32.totalorder %s24, 1
      %p68 = por %p66, %p67
      %p70 = scmp.ne.s32.totalorder %s55, %s69
      %p71 = scmp.eq.s32.totalorder %s24, 0
      %p72 = por %p70, %p71
      %s74 = sadd.s32 %s73, 1
      %p77 = scmp.eq.s32.totalorder %s18, 1
      %p78 = scmp.ne.s32.totalorder %s73, %s75
      %p79 = scmp.eq.s32.totalorder %s18, 0
      %p80 = por %p78, %p79
      %p81 = scmp.ne.s32.totalorder %s73, %s75
      %p82 = scmp.eq.s32.totalorder %s23, 1
      %p83 = por %p81, %p82
      %p84 = scmp.ne.s32.totalorder %s75, %s76
      %p85 = scmp.eq.s32.totalorder %s23, 0
      %p86 = por %p84, %p85
      %p87 = scmp.ne.s32.totalorder %s75, %s76
      %p88 = scmp.eq.s32.totalorder %s24, 1
      %p89 = por %p87, %p88
      %p91 = scmp.ne.s32.totalorder %s76, %s90
      %p92 = scmp.eq.s32.totalorder %s24, 0
      %p93 = por %p91, %p92
      %s95 = sadd.s32 %s94, 1
      %p98 = scmp.eq.s32.totalorder %s18, 1
      %p99 = scmp.ne.s32.totalorder %s94, %s96
      %p100 = scmp.eq.s32.totalorder %s18, 0
      %p101 = por %p99, %p100
      %p102 = scmp.ne.s32.totalorder %s94, %s96
      %p103 = scmp.eq.s32.totalorder %s23, 1
      %p104 = por %p102, %p103
      %p105 = scmp.ne.s32.totalorder %s96, %s97
      %p106 = scmp.eq.s32.totalorder %s23, 0
      %p107 = por %p105, %p106
      %p108 = scmp.ne.s32.totalorder %s96, %s97
      %p109 = scmp.eq.s32.totalorder %s24, 1
      %p110 = por %p108, %p109
      %p112 = scmp.ne.s32.totalorder %s97, %s111
      %p113 = scmp.eq.s32.totalorder %s24, 0
      %p114 = por %p112, %p113
      %s116 = sadd.s32 %s115, 1
      %p119 = scmp.eq.s32.totalorder %s18, 1
      %p120 = scmp.ne.s32.totalorder %s115, %s117
      %p121 = scmp.eq.s32.totalorder %s18, 0
      %p122 = por %p120, %p121
      %p123 = scmp.ne.s32.totalorder %s115, %s117
      %p124 = scmp.eq.s32.totalorder %s23, 1
      %p125 = por %p123, %p124
      %p126 = scmp.ne.s32.totalorder %s117, %s118
      %p127 = scmp.eq.s32.totalorder %s23, 0
      %p128 = por %p126, %p127
      %p129 = scmp.ne.s32.totalorder %s117, %s118
      %p130 = scmp.eq.s32.totalorder %s24, 1
      %p131 = por %p129, %p130
      %p133 = scmp.ne.s32.totalorder %s118, %s132
      %p134 = scmp.eq.s32.totalorder %s24, 0
      %p135 = por %p133, %p134
      %s136 = ssub.s32 %s18, %s25
      %p137 = scmp.eq.s32.totalorder %s136, 0
      %s139 = sadd.s32 %s138, 1
      %s140 = scalar_select %p137, %s138, %s139
      %p143 = pneg %p137
      %p144 = scmp.eq.s32.totalorder %s18, 1
      %p145 = por %p143, %p144
      %p146 = scmp.ne.s32.totalorder %s138, %s141
      %p147 = scmp.eq.s32.totalorder %s18, 0
      %p148 = por %p146, %p147
      %p149 = scmp.ne.s32.totalorder %s138, %s141
      %p150 = scmp.eq.s32.totalorder %s23, 1
      %p151 = por %p149, %p150
      %p152 = scmp.ne.s32.totalorder %s141, %s142
      %p153 = scmp.eq.s32.totalorder %s23, 0
      %p154 = por %p152, %p153
      %p155 = scmp.ne.s32.totalorder %s141, %s142
      %p156 = scmp.eq.s32.totalorder %s24, 1
      %p157 = por %p155, %p156
      %p159 = scmp.ne.s32.totalorder %s142, %s158
      %p160 = scmp.eq.s32.totalorder %s24, 0
      %p161 = por %p159, %p160
      %p162 = scmp.le.s32.totalorder 1, %s18
      %p163 = scmp.lt.s32.totalorder %s18, 3
      %p164 = pnand %p162, %p163
      %p165 = pneg %p164
      // Predicated region
      $region9: #{tpu_custom_call.1} parent=5 // pred_check
        _
      $region10: #{tpu_custom_call.1} parent=5 // pred_check_branch
        %167 = sbr.rel (%p164) target = $region12
      $region11: #{tpu_custom_call.1} parent=5 // pred_region
        %s168 = ssub.s32 %s18, 1
        // Predicated region
        $region13: #{tpu_custom_call.1} parent=11 // pred_check
          %p169 = pneg %p65
        $region14: #{tpu_custom_call.1} parent=11 // pred_check_branch
          %171 = sbr.rel (%p169) target = $region16
        $region15: #{tpu_custom_call.1} parent=11 // pred_region
          %s173 = ssub.s32 3072, 3072
          %174 = vsyncadd [#allocation6], %s173
          %s175 = sshll.u32 [#allocation5], 4
          %s176 = int_to_ptr.vmem [resolvable:$true] %s175
          %181 = dma.hbm_to_vmem [thread:$0]  %s1, 3072, %s176, [#allocation6], 192, 192, 12
        $region16: #{tpu_custom_call.1} parent=11 // pred_fallthru
          _
        // Predicated region
        $region17: #{tpu_custom_call.1} parent=11 // pred_check
          %p182 = pneg %p86
        $region18: #{tpu_custom_call.1} parent=11 // pred_check_branch
          %184 = sbr.rel (%p182) target = $region20
        $region19: #{tpu_custom_call.1} parent=11 // pred_region
          _
        $region20: #{tpu_custom_call.1} parent=11 // pred_fallthru
          _
        // Predicated region
        $region21: #{tpu_custom_call.1} parent=11 // pred_check
          %p185 = pneg %p107
        $region22: #{tpu_custom_call.1} parent=11 // pred_check_branch
          %187 = sbr.rel (%p185) target = $region24
        $region23: #{tpu_custom_call.1} parent=11 // pred_region
          %s189 = ssub.s32 1024, 1024
          %190 = vsyncadd [#allocation6], %s189
          %s191 = sshll.u32 [#allocation7], 4
          %s192 = int_to_ptr.vmem [resolvable:$true] %s191
          %197 = dma.hbm_to_vmem [thread:$0]  %s3, 1024, %s192, [#allocation6], 64, 64, 4
        $region24: #{tpu_custom_call.1} parent=11 // pred_fallthru
          _
        // Predicated region
        $region25: #{tpu_custom_call.1} parent=11 // pred_check
          %p198 = pneg %p128
        $region26: #{tpu_custom_call.1} parent=11 // pred_check_branch
          %200 = sbr.rel (%p198) target = $region28
        $region27: #{tpu_custom_call.1} parent=11 // pred_region
          _
        $region28: #{tpu_custom_call.1} parent=11 // pred_fallthru
          _
      $region12: #{tpu_custom_call.1} parent=5 // pred_fallthru
        _
      %p201 = scmp.lt.s32.totalorder %s18, 2
      // Predicated region
      $region29: #{tpu_custom_call.1} parent=5 // pred_check
        %p202 = pneg %p201
      $region30: #{tpu_custom_call.1} parent=5 // pred_check_branch
        %204 = sbr.rel (%p202) target = $region32
      $region31: #{tpu_custom_call.1} parent=5 // pred_region
        // Predicated region
        $region33: #{tpu_custom_call.1} parent=31 // pred_check
          %p205 = pneg %p38
        $region34: #{tpu_custom_call.1} parent=31 // pred_check_branch
          %207 = sbr.rel (%p205) target = $region36
        $region35: #{tpu_custom_call.1} parent=31 // pred_region
          %s208 = sand.u32 %s28, 1
          %s209 = scalar_lea.sflag [#allocation3], %s208
          %s210 = sand.u32 %s28, 1
          %s211 = smul.addr %s210, 8
          %s212 = scalar_lea.vmem [#allocation2], %s211
          %s214 = ssub.s32 128, 128
          %215 = vsyncadd %s209, %s214
          %s216 = smul.addr %s18, 2
          %s217 = smul.addr %s216, 64
          %s218 = scalar_lea.hbm %s0, %s217
          %s219 = sshll.u32 %s212, 4
          %s220 = int_to_ptr.vmem [resolvable:$true] %s219
          %225 = dma.hbm_to_vmem [thread:$0]  %s218, 128, %s220, %s209, 64, 64, 4
        $region36: #{tpu_custom_call.1} parent=31 // pred_fallthru
          _
      $region32: #{tpu_custom_call.1} parent=5 // pred_fallthru
        _
      %p226 = scmp.le.s32.totalorder 1, %s18
      %p227 = scmp.lt.s32.totalorder %s18, 3
      %p228 = pnand %p226, %p227
      %p229 = pneg %p228
      // Predicated region
      $region37: #{tpu_custom_call.1} parent=5 // pred_check
        _
      $region38: #{tpu_custom_call.1} parent=5 // pred_check_branch
        %231 = sbr.rel (%p228) target = $region40
      $region39: #{tpu_custom_call.1} parent=5 // pred_region
        %s232 = ssub.s32 %s18, 1
        %s233 = sand.u32 %s31, 1
        %s234 = scalar_lea.sflag [#allocation3], %s233
        %s235 = sand.u32 %s31, 1
        %s236 = smul.addr %s235, 8
        %s237 = scalar_lea.vmem [#allocation2], %s236
        // Predicated region
        $region41: #{tpu_custom_call.1} parent=39 // pred_check
          %p238 = pneg %p44
        $region42: #{tpu_custom_call.1} parent=39 // pred_check_branch
          %240 = sbr.rel (%p238) target = $region44
        $region43: #{tpu_custom_call.1} parent=39 // pred_region
          %241 = dma.done %s234, 128
        $region44: #{tpu_custom_call.1} parent=39 // pred_fallthru
          _
        // Predicated region
        $region45: #{tpu_custom_call.1} parent=39 // pred_check
          %p242 = pneg %p65
        $region46: #{tpu_custom_call.1} parent=39 // pred_check_branch
          %244 = sbr.rel (%p242) target = $region48
        $region47: #{tpu_custom_call.1} parent=39 // pred_region
          %245 = dma.done [#allocation6], 3072
        $region48: #{tpu_custom_call.1} parent=39 // pred_fallthru
          _
        // Predicated region
        $region49: #{tpu_custom_call.1} parent=39 // pred_check
          %p246 = pneg %p107
        $region50: #{tpu_custom_call.1} parent=39 // pred_check_branch
          %248 = sbr.rel (%p246) target = $region52
        $region51: #{tpu_custom_call.1} parent=39 // pred_region
          %249 = dma.done [#allocation6], 1024
        $region52: #{tpu_custom_call.1} parent=39 // pred_fallthru
          _
        %s250 = sand.u32 %s31, 1
        %s251 = scalar_lea.sflag [#allocation3], %s250
        %s252 = sand.u32 %s31, 1
        %s253 = smul.addr %s252, 8
        %s254 = scalar_lea.vmem [#allocation2], %s253
        %p255 = pneg %p44
        %p256 = pneg %p41
        %p257 = pneg %p65
        %p258 = pneg %p62
        %p259 = pneg %p86
        %p260 = pneg %p83
        %p261 = pneg %p107
        %p262 = pneg %p104
        %p263 = pneg %p128
        %p264 = pneg %p125
        %p265 = pneg %p154
        %p266 = pneg %p151
        %s267 = sand.u32 %s141, 1
        %s268 = scalar_lea.sflag [#allocation4], %s267
        %s269 = sand.u32 %s141, 1
        %s270 = smul.addr %s269, 16
        %s271 = scalar_lea.vmem [#allocation8], %s270
        %v273 = vld [vmem:[%s237] sm:$0xf]
        %v274 = vld [vmem:[%s237 + $0x4] sm:$0xf]
        %v275 = vld [vmem:[#allocation5] sm:$0xff]
        %v276 = vld [vmem:[#allocation5 + $0x8] sm:$0xf]
        %v277 = vld [vmem:[#allocation5 + $0xc] sm:$0xff]
        %v278 = vld [vmem:[#allocation5 + $0x14] sm:$0xf]
        %v279 = vld [vmem:[#allocation5 + $0x18] sm:$0xff]
        %v280 = vld [vmem:[#allocation5 + $0x20] sm:$0xf]
        %v281 = vld [vmem:[#allocation5 + $0x24] sm:$0xff]
        %v282 = vld [vmem:[#allocation5 + $0x2c] sm:$0xf]
        %v283 = vld [vmem:[#allocation5 + $0x30] sm:$0xff]
        %v284 = vld [vmem:[#allocation5 + $0x38] sm:$0xf]
        %v285 = vld [vmem:[#allocation5 + $0x3c] sm:$0xff]
        %v286 = vld [vmem:[#allocation5 + $0x44] sm:$0xf]
        %v287 = vld [vmem:[#allocation5 + $0x48] sm:$0xff]
        %v288 = vld [vmem:[#allocation5 + $0x50] sm:$0xf]
        %v289 = vld [vmem:[#allocation5 + $0x54] sm:$0xff]
        %v290 = vld [vmem:[#allocation5 + $0x5c] sm:$0xf]
        %v291 = vld [vmem:[#allocation5 + $0x60] sm:$0xff]
        %v292 = vld [vmem:[#allocation5 + $0x68] sm:$0xf]
        %v293 = vld [vmem:[#allocation5 + $0x6c] sm:$0xff]
        %v294 = vld [vmem:[#allocation5 + $0x74] sm:$0xf]
        %v295 = vld [vmem:[#allocation5 + $0x78] sm:$0xff]
        %v296 = vld [vmem:[#allocation5 + $0x80] sm:$0xf]
        %v297 = vld [vmem:[#allocation5 + $0x84] sm:$0xff]
        %v298 = vld [vmem:[#allocation5 + $0x8c] sm:$0xf]
        %v299 = vld [vmem:[#allocation5 + $0x90] sm:$0xff]
        %v300 = vld [vmem:[#allocation5 + $0x98] sm:$0xf]
        %v301 = vld [vmem:[#allocation5 + $0x9c] sm:$0xff]
        %v302 = vld [vmem:[#allocation5 + $0xa4] sm:$0xf]
        %v303 = vld [vmem:[#allocation5 + $0xa8] sm:$0xff]
        %v304 = vld [vmem:[#allocation5 + $0xb0] sm:$0xf]
        %v305 = vld [vmem:[#allocation5 + $0xb4] sm:$0xff]
        %v306 = vld [vmem:[#allocation5 + $0xbc] sm:$0xf]
        %v307 = vld [vmem:[%s2] sm:$0x7]
        %v309 = vlaneseq
        %v310 = vshrl.u32 %v309, 7
        %v311 = vsub.s32 0, %v310
        %v312 = vrot.slane %v307, %v311
        %v313 = vlaneseq
        %v314 = vshrl.u32 %v313, 7
        %v315 = vsub.s32 1, %v314
        %v316 = vrot.slane %v307, %v315
        %v317 = vlaneseq
        %v318 = vshrl.u32 %v317, 7
        %v319 = vsub.s32 2, %v318
        %v320 = vrot.slane %v307, %v319
        %v326 = vunpack.c.l.b16 %v273
        %v327 = vunpack.c.l.b16 %v274
        %v328 = vpack.c.b16 %v327, %v326
        %v362 = vunpack.c.l.b16 %v275
        %v363 = vunpack.c.h.b16 %v275
        %v364 = vunpack.c.l.b16 %v276
        %v365 = vunpack.c.l.b16 %v277
        %v366 = vunpack.c.h.b16 %v277
        %v367 = vunpack.c.l.b16 %v278
        %v368 = vunpack.c.l.b16 %v279
        %v369 = vunpack.c.h.b16 %v279
        %v370 = vunpack.c.l.b16 %v280
        %v371 = vunpack.c.l.b16 %v281
        %v372 = vunpack.c.h.b16 %v281
        %v373 = vunpack.c.l.b16 %v282
        %v374 = vunpack.c.l.b16 %v283
        %v375 = vunpack.c.h.b16 %v283
        %v376 = vunpack.c.l.b16 %v284
        %v377 = vunpack.c.l.b16 %v285
        %v378 = vunpack.c.h.b16 %v285
        %v379 = vunpack.c.l.b16 %v286
        %v380 = vunpack.c.l.b16 %v287
        %v381 = vunpack.c.h.b16 %v287
        %v382 = vunpack.c.l.b16 %v288
        %v383 = vunpack.c.l.b16 %v289
        %v384 = vunpack.c.h.b16 %v289
        %v385 = vunpack.c.l.b16 %v290
        %v386 = vunpack.c.l.b16 %v291
        %v387 = vunpack.c.h.b16 %v291
        %v388 = vunpack.c.l.b16 %v292
        %v389 = vunpack.c.l.b16 %v293
        %v390 = vunpack.c.h.b16 %v293
        %v391 = vunpack.c.l.b16 %v294
        %v392 = vunpack.c.l.b16 %v295
        %v393 = vunpack.c.h.b16 %v295
        %v394 = vunpack.c.l.b16 %v296
        %v395 = vunpack.c.l.b16 %v297
        %v396 = vunpack.c.h.b16 %v297
        %v397 = vunpack.c.l.b16 %v298
        %v398 = vunpack.c.l.b16 %v299
        %v399 = vunpack.c.h.b16 %v299
        %v400 = vunpack.c.l.b16 %v300
        %v401 = vunpack.c.l.b16 %v301
        %v402 = vunpack.c.h.b16 %v301
        %v403 = vunpack.c.l.b16 %v302
        %v404 = vunpack.c.l.b16 %v303
        %v405 = vunpack.c.h.b16 %v303
        %v406 = vunpack.c.l.b16 %v304
        %v407 = vunpack.c.l.b16 %v305
        %v408 = vunpack.c.h.b16 %v305
        %v409 = vunpack.c.l.b16 %v306
        %v410 = vpack.c.b16 %v365, %v362
        %v411 = vpack.c.b16 %v366, %v363
        %v412 = vpack.c.b16 %v367, %v364
        %v413 = vpack.c.b16 %v371, %v368
        %v414 = vpack.c.b16 %v372, %v369
        %v415 = vpack.c.b16 %v373, %v370
        %v416 = vpack.c.b16 %v377, %v374
        %v417 = vpack.c.b16 %v378, %v375
        %v418 = vpack.c.b16 %v379, %v376
        %v419 = vpack.c.b16 %v383, %v380
        %v420 = vpack.c.b16 %v384, %v381
        %v421 = vpack.c.b16 %v385, %v382
        %v422 = vpack.c.b16 %v389, %v386
        %v423 = vpack.c.b16 %v390, %v387
        %v424 = vpack.c.b16 %v391, %v388
        %v425 = vpack.c.b16 %v395, %v392
        %v426 = vpack.c.b16 %v396, %v393
        %v427 = vpack.c.b16 %v397, %v394
        %v428 = vpack.c.b16 %v401, %v398
        %v429 = vpack.c.b16 %v402, %v399
        %v430 = vpack.c.b16 %v403, %v400
        %v431 = vpack.c.b16 %v407, %v404
        %v432 = vpack.c.b16 %v408, %v405
        %v433 = vpack.c.b16 %v409, %v406
        %458 = vmatprep.subr.bf16.mxu0 %v411
        %459 = vmatpush1.bf16.msra.mxu0 %v410
        %460 = vmatprep.subr.bf16.mxu0 %v414
        %461 = vmatpush1.bf16.msra.mxu0 %v413
        %462 = vmatprep.subr.bf16.mxu0 %v417
        %463 = vmatpush1.bf16.msra.mxu0 %v416
        %464 = vmatprep.subr.bf16.mxu0 %v420
        %465 = vmatpush1.bf16.msra.mxu0 %v419
        %466 = vmatprep.subr.bf16.mxu0 %v423
        %467 = vmatpush1.bf16.msra.mxu0 %v422
        %468 = vmatprep.subr.bf16.mxu0 %v426
        %469 = vmatpush1.bf16.msra.mxu0 %v425
        %470 = vmatprep.subr.bf16.mxu0 %v429
        %471 = vmatpush1.bf16.msra.mxu0 %v428
        %472 = vmatprep.subr.bf16.mxu0 %v432
        %473 = vmatpush1.bf16.msra.mxu0 %v431
        %474 = vmatprep.subr.bf16.mxu0 0
        %475 = vmatpush1.bf16.msra.mxu0 0
        %476 = vmatprep.subr.bf16.mxu0 0
        %477 = vmatpush1.bf16.msra.mxu0 0
        %478 = vmatprep.subr.bf16.mxu0 0
        %479 = vmatpush1.bf16.msra.mxu0 0
        %480 = vmatprep.subr.bf16.mxu0 0
        %481 = vmatpush1.bf16.msra.mxu0 0
        %482 = vmatprep.subr.bf16.mxu0 0
        %483 = vmatpush1.bf16.msra.mxu0 0
        %484 = vmatprep.subr.bf16.mxu0 0
        %485 = vmatpush1.bf16.msra.mxu0 0
        %486 = vmatprep.subr.bf16.mxu0 0
        %487 = vmatpush1.bf16.msra.mxu0 0
        %488 = vmatprep.subr.bf16.mxu0 0
        %489 = vmatpush1.bf16.msra.mxu0 0
        %490 = vmatprep.mubr.bf16.mxu0 0
        %491 = vmatmul.mubr.bf16.gmra.mrb[0].mxu0 %v328
        %v492 = vpop.f32.mrb[0].mxu0
        %v493 = vadd.f32 %v312, %v492
        %v494 = vpop.f32.mrb[0].mxu0
        %v495 = vadd.f32 %v316, %v494
        %v496 = vpop.f32.mrb[0].mxu0
        %v497 = vadd.f32 %v312, %v496
        %v498 = vpop.f32.mrb[0].mxu0
        %v499 = vadd.f32 %v316, %v498
        %500 = vdwg.mxu0
        %501 = vmatprep.subr.bf16.mxu0 0
        %502 = vmatpush1.bf16.msra.mxu0 %v412
        %503 = vmatprep.subr.bf16.mxu0 0
        %504 = vmatpush1.bf16.msra.mxu0 %v415
        %505 = vmatprep.subr.bf16.mxu0 0
        %506 = vmatpush1.bf16.msra.mxu0 %v418
        %507 = vmatprep.subr.bf16.mxu0 0
        %508 = vmatpush1.bf16.msra.mxu0 %v421
        %509 = vmatprep.subr.bf16.mxu0 0
        %510 = vmatpush1.bf16.msra.mxu0 %v424
        %511 = vmatprep.subr.bf16.mxu0 0
        %512 = vmatpush1.bf16.msra.mxu0 %v427
        %513 = vmatprep.subr.bf16.mxu0 0
        %514 = vmatpush1.bf16.msra.mxu0 %v430
        %515 = vmatprep.subr.bf16.mxu0 0
        %516 = vmatpush1.bf16.msra.mxu0 %v433
        %517 = vmatprep.subr.bf16.mxu0 0
        %518 = vmatpush1.bf16.msra.mxu0 0
        %519 = vmatprep.subr.bf16.mxu0 0
        %520 = vmatpush1.bf16.msra.mxu0 0
        %521 = vmatprep.subr.bf16.mxu0 0
        %522 = vmatpush1.bf16.msra.mxu0 0
        %523 = vmatprep.subr.bf16.mxu0 0
        %524 = vmatpush1.bf16.msra.mxu0 0
        %525 = vmatprep.subr.bf16.mxu0 0
        %526 = vmatpush1.bf16.msra.mxu0 0
        %527 = vmatprep.subr.bf16.mxu0 0
        %528 = vmatpush1.bf16.msra.mxu0 0
        %529 = vmatprep.subr.bf16.mxu0 0
        %530 = vmatpush1.bf16.msra.mxu0 0
        %531 = vmatprep.subr.bf16.mxu0 0
        %532 = vmatpush1.bf16.msra.mxu0 0
        %533 = vmatprep.mubr.bf16.mxu0 0
        %534 = vmatmul.mubr.bf16.gmra.mrb[0].mxu0 %v328
        %v535 = vpop.f32.mrb[0].mxu0
        %v536 = vadd.f32 %v320, %v535
        %v537 = vpop.f32.mrb[0].mxu0
        %v538 = vpop.f32.mrb[0].mxu0
        %v539 = vadd.f32 %v320, %v538
        %v540 = vpop.f32.mrb[0].mxu0
        %541 = vdwg.mxu0
        %v542 = vpack.c.bf16 %v497, %v493
        %v543 = vpack.c.bf16 %v499, %v495
        %v544 = vpack.c.bf16 %v539, %v536
        %vm545 = vcmask 261120
        %v547 = vsel %vm545, %v542, 0
        %v550 = vsel %vm545, %v543, 0
        %552 = vmatprep.subr.bf16.mxu0 0
        %553 = vmatpush1.bf16.xpose.msra.mxu0 %v550
        %554 = vmatprep.subr.bf16.mxu0 0
        %555 = vmatpush1.bf16.xpose.msra.mxu0 0
        %556 = vmatprep.subr.bf16.mxu0 0
        %557 = vmatpush1.bf16.xpose.msra.mxu0 0
        %558 = vmatprep.subr.bf16.mxu0 0
        %559 = vmatpush1.bf16.xpose.msra.mxu0 0
        %560 = vmatprep.subr.bf16.mxu0 0
        %561 = vmatpush1.bf16.xpose.msra.mxu0 0
        %562 = vmatprep.subr.bf16.mxu0 0
        %563 = vmatpush1.bf16.xpose.msra.mxu0 0
        %564 = vmatprep.subr.bf16.mxu0 0
        %565 = vmatpush1.bf16.xpose.msra.mxu0 0
        %566 = vmatprep.subr.bf16.mxu0 0
        %567 = vmatpush1.bf16.xpose.msra.mxu0 0
        %568 = vmatprep.subr.bf16.mxu0 0
        %569 = vmatpush1.bf16.xpose.msra.mxu0 0
        %570 = vmatprep.subr.bf16.mxu0 0
        %571 = vmatpush1.bf16.xpose.msra.mxu0 0
        %572 = vmatprep.subr.bf16.mxu0 0
        %573 = vmatpush1.bf16.xpose.msra.mxu0 0
        %574 = vmatprep.subr.bf16.mxu0 0
        %575 = vmatpush1.bf16.xpose.msra.mxu0 0
        %576 = vmatprep.subr.bf16.mxu0 0
        %577 = vmatpush1.bf16.xpose.msra.mxu0 0
        %578 = vmatprep.subr.bf16.mxu0 0
        %579 = vmatpush1.bf16.xpose.msra.mxu0 0
        %580 = vmatprep.subr.bf16.mxu0 0
        %581 = vmatpush1.bf16.xpose.msra.mxu0 0
        %582 = vmatprep.subr.bf16.mxu0 0
        %583 = vmatpush1.bf16.xpose.msra.mxu0 0
        %584 = vmatprep.mubr.bf16.mxu0 0
        %585 = vmatmul.mubr.bf16.gmra.mrb[0].mxu0 %v547
        %v586 = vpop.f32.mrb[0].mxu0
        %v587 = vadd.f32 0.0, %v586
        %v588 = vpop.f32.mrb[0].mxu0
        %v589 = vpop.f32.mrb[0].mxu0
        %v590 = vadd.f32 0.0, %v589
        %v591 = vpop.f32.mrb[0].mxu0
        %592 = vdwg.mxu0
        %vm593 = vcmask 130048
        %v594 = vsel %vm593, %v587, -inf
        %595 = vmax.xlane.f32.xlu0 %v594
        %v596 = vpop.xlane.xlu0 %595
        %v597 = vsel %vm593, %v590, -inf
        %598 = vmax.xlane.f32.xlu0 %v597
        %v599 = vpop.xlane.xlu0 %598
        %v600 = vsub.f32 %v587, %v596
        %v601 = vsub.f32 %v590, %v599
        %v602 = vmul.f32 %v600, 1.442695
        %v603 = vpow.pop %v602
        %v604 = vmul.f32 %v601, 1.442695
        %v605 = vpow.pop %v604
        %v606 = vsel %vm593, %v603, 0.0
        %607 = vadd.xlane.f32.xlu0 %v606
        %v608 = vpop.xlane.xlu0 %607
        %v609 = vsel %vm593, %v605, 0.0
        %610 = vadd.xlane.f32.xlu0 %v609
        %v611 = vpop.xlane.xlu0 %610
        %v612 = vpack.c.bf16 %v605, %v603
        %v614 = vsel %vm593, %v612, 0
        %616 = vmatprep.subr.bf16.mxu0 0
        %617 = vmatpush1.bf16.msra.mxu0 %v544
        %618 = vmatprep.subr.bf16.mxu0 0
        %619 = vmatpush1.bf16.msra.mxu0 0
        %620 = vmatprep.subr.bf16.mxu0 0
        %621 = vmatpush1.bf16.msra.mxu0 0
        %622 = vmatprep.subr.bf16.mxu0 0
        %623 = vmatpush1.bf16.msra.mxu0 0
        %624 = vmatprep.subr.bf16.mxu0 0
        %625 = vmatpush1.bf16.msra.mxu0 0
        %626 = vmatprep.subr.bf16.mxu0 0
        %627 = vmatpush1.bf16.msra.mxu0 0
        %628 = vmatprep.subr.bf16.mxu0 0
        %629 = vmatpush1.bf16.msra.mxu0 0
        %630 = vmatprep.subr.bf16.mxu0 0
        %631 = vmatpush1.bf16.msra.mxu0 0
        %632 = vmatprep.subr.bf16.mxu0 0
        %633 = vmatpush1.bf16.msra.mxu0 0
        %634 = vmatprep.subr.bf16.mxu0 0
        %635 = vmatpush1.bf16.msra.mxu0 0
        %636 = vmatprep.subr.bf16.mxu0 0
        %637 = vmatpush1.bf16.msra.mxu0 0
        %638 = vmatprep.subr.bf16.mxu0 0
        %639 = vmatpush1.bf16.msra.mxu0 0
        %640 = vmatprep.subr.bf16.mxu0 0
        %641 = vmatpush1.bf16.msra.mxu0 0
        %642 = vmatprep.subr.bf16.mxu0 0
        %643 = vmatpush1.bf16.msra.mxu0 0
        %644 = vmatprep.subr.bf16.mxu0 0
        %645 = vmatpush1.bf16.msra.mxu0 0
        %646 = vmatprep.subr.bf16.mxu0 0
        %647 = vmatpush1.bf16.msra.mxu0 0
        %648 = vmatprep.mubr.bf16.mxu0 0
        %649 = vmatmul.mubr.bf16.gmra.mrb[0].mxu0 %v614
        %v650 = vpop.f32.mrb[0].mxu0
        %v651 = vadd.f32 0.0, %v650
        %v652 = vpop.f32.mrb[0].mxu0
        %v653 = vpop.f32.mrb[0].mxu0
        %v654 = vadd.f32 0.0, %v653
        %v655 = vpop.f32.mrb[0].mxu0
        %656 = vdwg.mxu0
        %v657 = vrcp.pop %v608
        %v658 = vrcp.pop %v611
        %v659 = vmul.f32 %v651, %v657
        %v660 = vmul.f32 %v654, %v658
        %v661 = vpack.c.bf16 %v660, %v659
        %663 = vrot.lane.b32.xlu0 %v542, 96
        %v664 = vpop.permute.xlu0 %663
        %666 = vrot.lane.b32.xlu0 %v543, 96
        %v667 = vpop.permute.xlu0 %666
        %v669 = vsel %vm545, %v664, 0
        %v672 = vsel %vm545, %v667, 0
        %674 = vmatprep.subr.bf16.mxu0 0
        %675 = vmatpush1.bf16.xpose.msra.mxu0 %v672
        %676 = vmatprep.subr.bf16.mxu0 0
        %677 = vmatpush1.bf16.xpose.msra.mxu0 0
        %678 = vmatprep.subr.bf16.mxu0 0
        %679 = vmatpush1.bf16.xpose.msra.mxu0 0
        %680 = vmatprep.subr.bf16.mxu0 0
        %681 = vmatpush1.bf16.xpose.msra.mxu0 0
        %682 = vmatprep.subr.bf16.mxu0 0
        %683 = vmatpush1.bf16.xpose.msra.mxu0 0
        %684 = vmatprep.subr.bf16.mxu0 0
        %685 = vmatpush1.bf16.xpose.msra.mxu0 0
        %686 = vmatprep.subr.bf16.mxu0 0
        %687 = vmatpush1.bf16.xpose.msra.mxu0 0
        %688 = vmatprep.subr.bf16.mxu0 0
        %689 = vmatpush1.bf16.xpose.msra.mxu0 0
        %690 = vmatprep.subr.bf16.mxu0 0
        %691 = vmatpush1.bf16.xpose.msra.mxu0 0
        %692 = vmatprep.subr.bf16.mxu0 0
        %693 = vmatpush1.bf16.xpose.msra.mxu0 0
        %694 = vmatprep.subr.bf16.mxu0 0
        %695 = vmatpush1.bf16.xpose.msra.mxu0 0
        %696 = vmatprep.subr.bf16.mxu0 0
        %697 = vmatpush1.bf16.xpose.msra.mxu0 0
        %698 = vmatprep.subr.bf16.mxu0 0
        %699 = vmatpush1.bf16.xpose.msra.mxu0 0
        %700 = vmatprep.subr.bf16.mxu0 0
        %701 = vmatpush1.bf16.xpose.msra.mxu0 0
        %702 = vmatprep.subr.bf16.mxu0 0
        %703 = vmatpush1.bf16.xpose.msra.mxu0 0
        %704 = vmatprep.subr.bf16.mxu0 0
        %705 = vmatpush1.bf16.xpose.msra.mxu0 0
        %706 = vmatprep.mubr.bf16.mxu0 0
        %707 = vmatmul.mubr.bf16.gmra.mrb[0].mxu0 %v669
        %v708 = vpop.f32.mrb[0].mxu0
        %v709 = vadd.f32 0.0, %v708
        %v710 = vpop.f32.mrb[0].mxu0
        %v711 = vpop.f32.mrb[0].mxu0
        %v712 = vadd.f32 0.0, %v711
        %v713 = vpop.f32.mrb[0].mxu0
        %714 = vdwg.mxu0
        %v715 = vsel %vm593, %v709, -inf
        %716 = vmax.xlane.f32.xlu0 %v715
        %v717 = vpop.xlane.xlu0 %716
        %v718 = vsel %vm593, %v712, -inf
        %719 = vmax.xlane.f32.xlu0 %v718
        %v720 = vpop.xlane.xlu0 %719
        %v721 = vsub.f32 %v709, %v717
        %v722 = vsub.f32 %v712, %v720
        %v723 = vmul.f32 %v721, 1.442695
        %v724 = vpow.pop %v723
        %v725 = vmul.f32 %v722, 1.442695
        %v726 = vpow.pop %v725
        %v727 = vsel %vm593, %v724, 0.0
        %728 = vadd.xlane.f32.xlu0 %v727
        %v729 = vpop.xlane.xlu0 %728
        %v730 = vsel %vm593, %v726, 0.0
        %731 = vadd.xlane.f32.xlu0 %v730
        %v732 = vpop.xlane.xlu0 %731
        %v733 = vpack.c.bf16 %v726, %v724
        %735 = vrot.lane.b32.xlu0 %v544, 96
        %v736 = vpop.permute.xlu0 %735
        %v739 = vsel %vm593, %v733, 0
        %741 = vmatprep.subr.bf16.mxu0 0
        %742 = vmatpush1.bf16.msra.mxu0 %v736
        %743 = vmatprep.subr.bf16.mxu0 0
        %744 = vmatpush1.bf16.msra.mxu0 0
        %745 = vmatprep.subr.bf16.mxu0 0
        %746 = vmatpush1.bf16.msra.mxu0 0
        %747 = vmatprep.subr.bf16.mxu0 0
        %748 = vmatpush1.bf16.msra.mxu0 0
        %749 = vmatprep.subr.bf16.mxu0 0
        %750 = vmatpush1.bf16.msra.mxu0 0
        %751 = vmatprep.subr.bf16.mxu0 0
        %752 = vmatpush1.bf16.msra.mxu0 0
        %753 = vmatprep.subr.bf16.mxu0 0
        %754 = vmatpush1.bf16.msra.mxu0 0
        %755 = vmatprep.subr.bf16.mxu0 0
        %756 = vmatpush1.bf16.msra.mxu0 0
        %757 = vmatprep.subr.bf16.mxu0 0
        %758 = vmatpush1.bf16.msra.mxu0 0
        %759 = vmatprep.subr.bf16.mxu0 0
        %760 = vmatpush1.bf16.msra.mxu0 0
        %761 = vmatprep.subr.bf16.mxu0 0
        %762 = vmatpush1.bf16.msra.mxu0 0
        %763 = vmatprep.subr.bf16.mxu0 0
        %764 = vmatpush1.bf16.msra.mxu0 0
        %765 = vmatprep.subr.bf16.mxu0 0
        %766 = vmatpush1.bf16.msra.mxu0 0
        %767 = vmatprep.subr.bf16.mxu0 0
        %768 = vmatpush1.bf16.msra.mxu0 0
        %769 = vmatprep.subr.bf16.mxu0 0
        %770 = vmatpush1.bf16.msra.mxu0 0
        %771 = vmatprep.subr.bf16.mxu0 0
        %772 = vmatpush1.bf16.msra.mxu0 0
        %773 = vmatprep.mubr.bf16.mxu0 0
        %774 = vmatmul.mubr.bf16.gmra.mrb[0].mxu0 %v739
        %v775 = vpop.f32.mrb[0].mxu0
        %v776 = vadd.f32 0.0, %v775
        %v777 = vpop.f32.mrb[0].mxu0
        %v778 = vpop.f32.mrb[0].mxu0
        %v779 = vadd.f32 0.0, %v778
        %v780 = vpop.f32.mrb[0].mxu0
        %781 = vdwg.mxu0
        %v782 = vrcp.pop %v729
        %v783 = vrcp.pop %v732
        %v784 = vmul.f32 %v776, %v782
        %v785 = vmul.f32 %v779, %v783
        %v786 = vpack.c.bf16 %v785, %v784
        %787 = vrot.lane.b32.xlu0 %v542, 64
        %v788 = vpop.permute.xlu0 %787
        %789 = vrot.lane.b32.xlu0 %v543, 64
        %v790 = vpop.permute.xlu0 %789
        %v792 = vsel %vm545, %v788, 0
        %v795 = vsel %vm545, %v790, 0
        %797 = vmatprep.subr.bf16.mxu0 0
        %798 = vmatpush1.bf16.xpose.msra.mxu0 %v795
        %799 = vmatprep.subr.bf16.mxu0 0
        %800 = vmatpush1.bf16.xpose.msra.mxu0 0
        %801 = vmatprep.subr.bf16.mxu0 0
        %802 = vmatpush1.bf16.xpose.msra.mxu0 0
        %803 = vmatprep.subr.bf16.mxu0 0
        %804 = vmatpush1.bf16.xpose.msra.mxu0 0
        %805 = vmatprep.subr.bf16.mxu0 0
        %806 = vmatpush1.bf16.xpose.msra.mxu0 0
        %807 = vmatprep.subr.bf16.mxu0 0
        %808 = vmatpush1.bf16.xpose.msra.mxu0 0
        %809 = vmatprep.subr.bf16.mxu0 0
        %810 = vmatpush1.bf16.xpose.msra.mxu0 0
        %811 = vmatprep.subr.bf16.mxu0 0
        %812 = vmatpush1.bf16.xpose.msra.mxu0 0
        %813 = vmatprep.subr.bf16.mxu0 0
        %814 = vmatpush1.bf16.xpose.msra.mxu0 0
        %815 = vmatprep.subr.bf16.mxu0 0
        %816 = vmatpush1.bf16.xpose.msra.mxu0 0
        %817 = vmatprep.subr.bf16.mxu0 0
        %818 = vmatpush1.bf16.xpose.msra.mxu0 0
        %819 = vmatprep.subr.bf16.mxu0 0
        %820 = vmatpush1.bf16.xpose.msra.mxu0 0
        %821 = vmatprep.subr.bf16.mxu0 0
        %822 = vmatpush1.bf16.xpose.msra.mxu0 0
        %823 = vmatprep.subr.bf16.mxu0 0
        %824 = vmatpush1.bf16.xpose.msra.mxu0 0
        %825 = vmatprep.subr.bf16.mxu0 0
        %826 = vmatpush1.bf16.xpose.msra.mxu0 0
        %827 = vmatprep.subr.bf16.mxu0 0
        %828 = vmatpush1.bf16.xpose.msra.mxu0 0
        %829 = vmatprep.mubr.bf16.mxu0 0
        %830 = vmatmul.mubr.bf16.gmra.mrb[0].mxu0 %v792
        %v831 = vpop.f32.mrb[0].mxu0
        %v832 = vadd.f32 0.0, %v831
        %v833 = vpop.f32.mrb[0].mxu0
        %v834 = vpop.f32.mrb[0].mxu0
        %v835 = vadd.f32 0.0, %v834
        %v836 = vpop.f32.mrb[0].mxu0
        %837 = vdwg.mxu0
        %v838 = vsel %vm593, %v832, -inf
        %839 = vmax.xlane.f32.xlu0 %v838
        %v840 = vpop.xlane.xlu0 %839
        %v841 = vsel %vm593, %v835, -inf
        %842 = vmax.xlane.f32.xlu0 %v841
        %v843 = vpop.xlane.xlu0 %842
        %v844 = vsub.f32 %v832, %v840
        %v845 = vsub.f32 %v835, %v843
        %v846 = vmul.f32 %v844, 1.442695
        %v847 = vpow.pop %v846
        %v848 = vmul.f32 %v845, 1.442695
        %v849 = vpow.pop %v848
        %v850 = vsel %vm593, %v847, 0.0
        %851 = vadd.xlane.f32.xlu0 %v850
        %v852 = vpop.xlane.xlu0 %851
        %v853 = vsel %vm593, %v849, 0.0
        %854 = vadd.xlane.f32.xlu0 %v853
        %v855 = vpop.xlane.xlu0 %854
        %v856 = vpack.c.bf16 %v849, %v847
        %857 = vrot.lane.b32.xlu0 %v544, 64
        %v858 = vpop.permute.xlu0 %857
        %v861 = vsel %vm593, %v856, 0
        %863 = vmatprep.subr.bf16.mxu0 0
        %864 = vmatpush1.bf16.msra.mxu0 %v858
        %865 = vmatprep.subr.bf16.mxu0 0
        %866 = vmatpush1.bf16.msra.mxu0 0
        %867 = vmatprep.subr.bf16.mxu0 0
        %868 = vmatpush1.bf16.msra.mxu0 0
        %869 = vmatprep.subr.bf16.mxu0 0
        %870 = vmatpush1.bf16.msra.mxu0 0
        %871 = vmatprep.subr.bf16.mxu0 0
        %872 = vmatpush1.bf16.msra.mxu0 0
        %873 = vmatprep.subr.bf16.mxu0 0
        %874 = vmatpush1.bf16.msra.mxu0 0
        %875 = vmatprep.subr.bf16.mxu0 0
        %876 = vmatpush1.bf16.msra.mxu0 0
        %877 = vmatprep.subr.bf16.mxu0 0
        %878 = vmatpush1.bf16.msra.mxu0 0
        %879 = vmatprep.subr.bf16.mxu0 0
        %880 = vmatpush1.bf16.msra.mxu0 0
        %881 = vmatprep.subr.bf16.mxu0 0
        %882 = vmatpush1.bf16.msra.mxu0 0
        %883 = vmatprep.subr.bf16.mxu0 0
        %884 = vmatpush1.bf16.msra.mxu0 0
        %885 = vmatprep.subr.bf16.mxu0 0
        %886 = vmatpush1.bf16.msra.mxu0 0
        %887 = vmatprep.subr.bf16.mxu0 0
        %888 = vmatpush1.bf16.msra.mxu0 0
        %889 = vmatprep.subr.bf16.mxu0 0
        %890 = vmatpush1.bf16.msra.mxu0 0
        %891 = vmatprep.subr.bf16.mxu0 0
        %892 = vmatpush1.bf16.msra.mxu0 0
        %893 = vmatprep.subr.bf16.mxu0 0
        %894 = vmatpush1.bf16.msra.mxu0 0
        %895 = vmatprep.mubr.bf16.mxu0 0
        %896 = vmatmul.mubr.bf16.gmra.mrb[0].mxu0 %v861
        %v897 = vpop.f32.mrb[0].mxu0
        %v898 = vadd.f32 0.0, %v897
        %v899 = vpop.f32.mrb[0].mxu0
        %v900 = vpop.f32.mrb[0].mxu0
        %v901 = vadd.f32 0.0, %v900
        %v902 = vpop.f32.mrb[0].mxu0
        %903 = vdwg.mxu0
        %v904 = vrcp.pop %v852
        %v905 = vrcp.pop %v855
        %v906 = vmul.f32 %v898, %v904
        %v907 = vmul.f32 %v901, %v905
        %v908 = vpack.c.bf16 %v907, %v906
        %909 = vrot.lane.b32.xlu0 %v542, 32
        %v910 = vpop.permute.xlu0 %909
        %911 = vrot.lane.b32.xlu0 %v543, 32
        %v912 = vpop.permute.xlu0 %911
        %v914 = vsel %vm545, %v910, 0
        %v917 = vsel %vm545, %v912, 0
        %919 = vmatprep.subr.bf16.mxu0 0
        %920 = vmatpush1.bf16.xpose.msra.mxu0 %v917
        %921 = vmatprep.subr.bf16.mxu0 0
        %922 = vmatpush1.bf16.xpose.msra.mxu0 0
        %923 = vmatprep.subr.bf16.mxu0 0
        %924 = vmatpush1.bf16.xpose.msra.mxu0 0
        %925 = vmatprep.subr.bf16.mxu0 0
        %926 = vmatpush1.bf16.xpose.msra.mxu0 0
        %927 = vmatprep.subr.bf16.mxu0 0
        %928 = vmatpush1.bf16.xpose.msra.mxu0 0
        %929 = vmatprep.subr.bf16.mxu0 0
        %930 = vmatpush1.bf16.xpose.msra.mxu0 0
        %931 = vmatprep.subr.bf16.mxu0 0
        %932 = vmatpush1.bf16.xpose.msra.mxu0 0
        %933 = vmatprep.subr.bf16.mxu0 0
        %934 = vmatpush1.bf16.xpose.msra.mxu0 0
        %935 = vmatprep.subr.bf16.mxu0 0
        %936 = vmatpush1.bf16.xpose.msra.mxu0 0
        %937 = vmatprep.subr.bf16.mxu0 0
        %938 = vmatpush1.bf16.xpose.msra.mxu0 0
        %939 = vmatprep.subr.bf16.mxu0 0
        %940 = vmatpush1.bf16.xpose.msra.mxu0 0
        %941 = vmatprep.subr.bf16.mxu0 0
        %942 = vmatpush1.bf16.xpose.msra.mxu0 0
        %943 = vmatprep.subr.bf16.mxu0 0
        %944 = vmatpush1.bf16.xpose.msra.mxu0 0
        %945 = vmatprep.subr.bf16.mxu0 0
        %946 = vmatpush1.bf16.xpose.msra.mxu0 0
        %947 = vmatprep.subr.bf16.mxu0 0
        %948 = vmatpush1.bf16.xpose.msra.mxu0 0
        %949 = vmatprep.subr.bf16.mxu0 0
        %950 = vmatpush1.bf16.xpose.msra.mxu0 0
        %951 = vmatprep.mubr.bf16.mxu0 0
        %952 = vmatmul.mubr.bf16.gmra.mrb[0].mxu0 %v914
        %v953 = vpop.f32.mrb[0].mxu0
        %v954 = vadd.f32 0.0, %v953
        %v955 = vpop.f32.mrb[0].mxu0
        %v956 = vpop.f32.mrb[0].mxu0
        %v957 = vadd.f32 0.0, %v956
        %v958 = vpop.f32.mrb[0].mxu0
        %959 = vdwg.mxu0
        %v960 = vsel %vm593, %v954, -inf
        %961 = vmax.xlane.f32.xlu0 %v960
        %v962 = vpop.xlane.xlu0 %961
        %v963 = vsel %vm593, %v957, -inf
        %964 = vmax.xlane.f32.xlu0 %v963
        %v965 = vpop.xlane.xlu0 %964
        %v966 = vsub.f32 %v954, %v962
        %v967 = vsub.f32 %v957, %v965
        %v968 = vmul.f32 %v966, 1.442695
        %v969 = vpow.pop %v968
        %v970 = vmul.f32 %v967, 1.442695
        %v971 = vpow.pop %v970
        %v972 = vsel %vm593, %v969, 0.0
        %973 = vadd.xlane.f32.xlu0 %v972
        %v974 = vpop.xlane.xlu0 %973
        %v975 = vsel %vm593, %v971, 0.0
        %976 = vadd.xlane.f32.xlu0 %v975
        %v977 = vpop.xlane.xlu0 %976
        %v978 = vpack.c.bf16 %v971, %v969
        %979 = vrot.lane.b32.xlu0 %v544, 32
        %v980 = vpop.permute.xlu0 %979
        %v983 = vsel %vm593, %v978, 0
        %985 = vmatprep.subr.bf16.mxu0 0
        %986 = vmatpush1.bf16.msra.mxu0 %v980
        %987 = vmatprep.subr.bf16.mxu0 0
        %988 = vmatpush1.bf16.msra.mxu0 0
        %989 = vmatprep.subr.bf16.mxu0 0
        %990 = vmatpush1.bf16.msra.mxu0 0
        %991 = vmatprep.subr.bf16.mxu0 0
        %992 = vmatpush1.bf16.msra.mxu0 0
        %993 = vmatprep.subr.bf16.mxu0 0
        %994 = vmatpush1.bf16.msra.mxu0 0
        %995 = vmatprep.subr.bf16.mxu0 0
        %996 = vmatpush1.bf16.msra.mxu0 0
        %997 = vmatprep.subr.bf16.mxu0 0
        %998 = vmatpush1.bf16.msra.mxu0 0
        %999 = vmatprep.subr.bf16.mxu0 0
        %1000 = vmatpush1.bf16.msra.mxu0 0
        %1001 = vmatprep.subr.bf16.mxu0 0
        %1002 = vmatpush1.bf16.msra.mxu0 0
        %1003 = vmatprep.subr.bf16.mxu0 0
        %1004 = vmatpush1.bf16.msra.mxu0 0
        %1005 = vmatprep.subr.bf16.mxu0 0
        %1006 = vmatpush1.bf16.msra.mxu0 0
        %1007 = vmatprep.subr.bf16.mxu0 0
        %1008 = vmatpush1.bf16.msra.mxu0 0
        %1009 = vmatprep.subr.bf16.mxu0 0
        %1010 = vmatpush1.bf16.msra.mxu0 0
        %1011 = vmatprep.subr.bf16.mxu0 0
        %1012 = vmatpush1.bf16.msra.mxu0 0
        %1013 = vmatprep.subr.bf16.mxu0 0
        %1014 = vmatpush1.bf16.msra.mxu0 0
        %1015 = vmatprep.subr.bf16.mxu0 0
        %1016 = vmatpush1.bf16.msra.mxu0 0
        %1017 = vmatprep.mubr.bf16.mxu0 0
        %1018 = vmatmul.mubr.bf16.gmra.mrb[0].mxu0 %v983
        %v1019 = vpop.f32.mrb[0].mxu0
        %v1020 = vadd.f32 0.0, %v1019
        %v1021 = vpop.f32.mrb[0].mxu0
        %v1022 = vpop.f32.mrb[0].mxu0
        %v1023 = vadd.f32 0.0, %v1022
        %v1024 = vpop.f32.mrb[0].mxu0
        %1025 = vdwg.mxu0
        %v1026 = vrcp.pop %v974
        %v1027 = vrcp.pop %v977
        %v1028 = vmul.f32 %v1020, %v1026
        %v1029 = vmul.f32 %v1023, %v1027
        %v1030 = vpack.c.bf16 %v1029, %v1028
        %1032 = vrot.lane.b32.xlu0 %v786, 32
        %v1033 = vpop.permute.xlu0 %1032
        %1035 = vrot.lane.b32.xlu0 %v908, 64
        %v1036 = vpop.permute.xlu0 %1035
        %1038 = vrot.lane.b32.xlu0 %v1030, 96
        %v1039 = vpop.permute.xlu0 %1038
        %v1042 = vsel %vm545, %v661, %v1033
        %vm1043 = vcmask 523264
        %v1045 = vsel %vm1043, %v1042, %v1036
        %vm1046 = vcmask 785408
        %v1048 = vsel %vm1046, %v1045, %v1039
        %v1050 = vld [vmem:[#allocation7] sm:$0xf]
        %v1051 = vld [vmem:[#allocation7 + $0x4] sm:$0xf]
        %v1052 = vld [vmem:[#allocation7 + $0x8] sm:$0xf]
        %v1053 = vld [vmem:[#allocation7 + $0xc] sm:$0xf]
        %v1054 = vld [vmem:[#allocation7 + $0x10] sm:$0xf]
        %v1055 = vld [vmem:[#allocation7 + $0x14] sm:$0xf]
        %v1056 = vld [vmem:[#allocation7 + $0x18] sm:$0xf]
        %v1057 = vld [vmem:[#allocation7 + $0x1c] sm:$0xf]
        %v1058 = vld [vmem:[#allocation7 + $0x20] sm:$0xf]
        %v1059 = vld [vmem:[#allocation7 + $0x24] sm:$0xf]
        %v1060 = vld [vmem:[#allocation7 + $0x28] sm:$0xf]
        %v1061 = vld [vmem:[#allocation7 + $0x2c] sm:$0xf]
        %v1062 = vld [vmem:[#allocation7 + $0x30] sm:$0xf]
        %v1063 = vld [vmem:[#allocation7 + $0x34] sm:$0xf]
        %v1064 = vld [vmem:[#allocation7 + $0x38] sm:$0xf]
        %v1065 = vld [vmem:[#allocation7 + $0x3c] sm:$0xf]
        %v1066 = vld [vmem:[%s4] sm:$0x1]
        %v1068 = vlaneseq
        %v1069 = vshrl.u32 %v1068, 7
        %v1070 = vsub.s32 0, %v1069
        %v1071 = vrot.slane %v1066, %v1070
        %v1089 = vunpack.c.l.b16 %v1050
        %v1090 = vunpack.c.l.b16 %v1051
        %v1091 = vunpack.c.l.b16 %v1052
        %v1092 = vunpack.c.l.b16 %v1053
        %v1093 = vunpack.c.l.b16 %v1054
        %v1094 = vunpack.c.l.b16 %v1055
        %v1095 = vunpack.c.l.b16 %v1056
        %v1096 = vunpack.c.l.b16 %v1057
        %v1097 = vunpack.c.l.b16 %v1058
        %v1098 = vunpack.c.l.b16 %v1059
        %v1099 = vunpack.c.l.b16 %v1060
        %v1100 = vunpack.c.l.b16 %v1061
        %v1101 = vunpack.c.l.b16 %v1062
        %v1102 = vunpack.c.l.b16 %v1063
        %v1103 = vunpack.c.l.b16 %v1064
        %v1104 = vunpack.c.l.b16 %v1065
        %v1105 = vpack.c.b16 %v1090, %v1089
        %v1106 = vpack.c.b16 %v1092, %v1091
        %v1107 = vpack.c.b16 %v1094, %v1093
        %v1108 = vpack.c.b16 %v1096, %v1095
        %v1109 = vpack.c.b16 %v1098, %v1097
        %v1110 = vpack.c.b16 %v1100, %v1099
        %v1111 = vpack.c.b16 %v1102, %v1101
        %v1112 = vpack.c.b16 %v1104, %v1103
        %1121 = vmatprep.subr.bf16.mxu0 0
        %1122 = vmatpush1.bf16.msra.mxu0 %v1105
        %1123 = vmatprep.subr.bf16.mxu0 0
        %1124 = vmatpush1.bf16.msra.mxu0 %v1106
        %1125 = vmatprep.subr.bf16.mxu0 0
        %1126 = vmatpush1.bf16.msra.mxu0 %v1107
        %1127 = vmatprep.subr.bf16.mxu0 0
        %1128 = vmatpush1.bf16.msra.mxu0 %v1108
        %1129 = vmatprep.subr.bf16.mxu0 0
        %1130 = vmatpush1.bf16.msra.mxu0 %v1109
        %1131 = vmatprep.subr.bf16.mxu0 0
        %1132 = vmatpush1.bf16.msra.mxu0 %v1110
        %1133 = vmatprep.subr.bf16.mxu0 0
        %1134 = vmatpush1.bf16.msra.mxu0 %v1111
        %1135 = vmatprep.subr.bf16.mxu0 0
        %1136 = vmatpush1.bf16.msra.mxu0 %v1112
        %1137 = vmatprep.subr.bf16.mxu0 0
        %1138 = vmatpush1.bf16.msra.mxu0 0
        %1139 = vmatprep.subr.bf16.mxu0 0
        %1140 = vmatpush1.bf16.msra.mxu0 0
        %1141 = vmatprep.subr.bf16.mxu0 0
        %1142 = vmatpush1.bf16.msra.mxu0 0
        %1143 = vmatprep.subr.bf16.mxu0 0
        %1144 = vmatpush1.bf16.msra.mxu0 0
        %1145 = vmatprep.subr.bf16.mxu0 0
        %1146 = vmatpush1.bf16.msra.mxu0 0
        %1147 = vmatprep.subr.bf16.mxu0 0
        %1148 = vmatpush1.bf16.msra.mxu0 0
        %1149 = vmatprep.subr.bf16.mxu0 0
        %1150 = vmatpush1.bf16.msra.mxu0 0
        %1151 = vmatprep.subr.bf16.mxu0 0
        %1152 = vmatpush1.bf16.msra.mxu0 0
        %1153 = vmatprep.mubr.bf16.mxu0 0
        %1154 = vmatmul.mubr.bf16.gmra.mrb[0].mxu0 %v1048
        %v1155 = vpop.f32.mrb[0].mxu0
        %v1156 = vadd.f32 %v1071, %v1155
        %v1157 = vpop.f32.mrb[0].mxu0
        %v1158 = vpop.f32.mrb[0].mxu0
        %v1159 = vadd.f32 %v1071, %v1158
        %v1160 = vpop.f32.mrb[0].mxu0
        %1161 = vdwg.mxu0
        %1162 = vst [vmem:[%s271] sm:$0xff] %v1156
        %1163 = vst [vmem:[%s271 + $0x8] sm:$0xff] %v1159
        %s1164 = sand.u32 %s141, 1
        %s1165 = scalar_lea.sflag [#allocation4], %s1164
        %s1166 = sand.u32 %s141, 1
        %s1167 = smul.addr %s1166, 16
        %s1168 = scalar_lea.vmem [#allocation8], %s1167
        // Predicated region
        $region53: #{tpu_custom_call.1} parent=39 // pred_check
          %p1169 = pneg %p151
        $region54: #{tpu_custom_call.1} parent=39 // pred_check_branch
          %1171 = sbr.rel (%p1169) target = $region56
        $region55: #{tpu_custom_call.1} parent=39 // pred_region
          %s1173 = ssub.s32 256, 256
          %1174 = vsyncadd %s1165, %s1173
          %s1175 = smul.addr %s23, 2
          %s1176 = smul.addr %s1175, 128
          %s1177 = scalar_lea.hbm %s5, %s1176
          %s1178 = sshll.u32 %s1168, 4
          %s1179 = int_to_ptr.vmem [resolvable:$true] %s1178
          %1184 = dma.vmem_to_hbm [thread:$0]  %s1179, 256, %s1177, %s1165, 128, 128, 8
        $region56: #{tpu_custom_call.1} parent=39 // pred_fallthru
          _
      $region40: #{tpu_custom_call.1} parent=5 // pred_fallthru
        _
      %p1185 = scmp.le.s32.totalorder 2, %s18
      // Predicated region
      $region57: #{tpu_custom_call.1} parent=5 // pred_check
        %p1186 = pneg %p1185
      $region58: #{tpu_custom_call.1} parent=5 // pred_check_branch
        %1188 = sbr.rel (%p1186) target = $region60
      $region59: #{tpu_custom_call.1} parent=5 // pred_region
        %s1189 = ssub.s32 %s18, 2
        // Predicated region
        $region61: #{tpu_custom_call.1} parent=59 // pred_check
          %p1190 = pneg %p157
        $region62: #{tpu_custom_call.1} parent=59 // pred_check_branch
          %1192 = sbr.rel (%p1190) target = $region64
        $region63: #{tpu_custom_call.1} parent=59 // pred_region
          %s1193 = sand.u32 %s142, 1
          %s1194 = scalar_lea.sflag [#allocation4], %s1193
          %s1195 = sand.u32 %s142, 1
          %s1196 = smul.addr %s1195, 16
          %s1197 = scalar_lea.vmem [#allocation8], %s1196
          %1198 = dma.done %s1194, 256
        $region64: #{tpu_custom_call.1} parent=59 // pred_fallthru
          _
      $region60: #{tpu_custom_call.1} parent=5 // pred_fallthru
        _
    $region6: #{tpu_custom_call.1} parent=1 // loop_footer
      %s22 = sadd.s32 1, %s18
    $region7: #{tpu_custom_call.1} parent=1 // loop_footer_branch
      %17 = sbr.rel target = $region3
    $region8: #{tpu_custom_call.1} parent=1 // loop_exit
      _
    %1199 = vsyncpa [#allocation3], 1
    %s1200 = scalar_lea.sflag [#allocation3], 1
    %1201 = vsyncpa %s1200, 1
    %1202 = vsyncpa [#allocation6], 1
    %1203 = vsyncpa [#allocation4], 1
    %s1204 = scalar_lea.sflag [#allocation4], 1
    %1205 = vsyncpa %s1204, 1

</llo_original>
